<compile_context>
chip_gen: v6e
topology: v6e:2x2x1
jax: 0.10.0
libtpu: 0.0.40
codegen_flags: <defaults>
</compile_context>

<pallas_src>
import jax
import jax.numpy as jnp
from jax.experimental import pallas as pl
from jax.experimental.pallas import tpu as pltpu


def _round_up(x, m):
    return ((x + m - 1) // m) * m


def _self_attention_kernel(target_ref, neighs_ref, kernels_ref,
                           ws_ref, bs_ref, wc_ref, cc_ref,
                           sel_score_ref, sel_expand_ref, sel_gather_ref,
                           wv_ref, bv_ref, out_ref):
    f32, bf16 = jnp.float32, jnp.bfloat16

    target = target_ref[...]                                   # (TB, H)  bf16
    neighs = neighs_ref[...]                                   # (TB, KH) bf16

    # Folded query/key score weight, tiled K times along the columns.
    qs_tiled = jnp.dot(target, ws_ref[...],
                       preferred_element_type=f32) + bs_ref[...]        # (TB, KH) f32

    # Per-row score constant (replicated across the K columns via wc/cc).
    c = jnp.dot(target, wc_ref[...],
                preferred_element_type=f32) + cc_ref[...]               # (TB, K) f32

    # scores[b,k] = sum_h qs[b,h] * neighs[b,k,h]  (segment-sum selector) + c[b]
    prod = qs_tiled.astype(bf16) * neighs                               # (TB, KH) bf16
    scores = jnp.dot(prod, sel_score_ref[...],
                     preferred_element_type=f32) + c                    # (TB, K) f32
    scores = scores * kernels_ref[...].astype(f32)

    # Softmax over K (exp + approx reciprocal go to the EUP slot).
    scores = scores - jnp.max(scores, axis=-1, keepdims=True)
    e = jnp.exp(scores)
    p = e * pl.reciprocal(jnp.sum(e, axis=-1, keepdims=True), approx=True)

    # weighted[b,h] = sum_k p[b,k] * neighs[b,k,h]; the value projection is
    # applied AFTER this sum (exact: softmax weights sum to 1, bv passes through).
    p_big = jnp.dot(p.astype(bf16), sel_expand_ref[...],
                    preferred_element_type=f32)                          # (TB, KH)
    wprod = p_big.astype(bf16) * neighs                                  # (TB, KH) bf16
    weighted = jnp.dot(wprod, sel_gather_ref[...],
                       preferred_element_type=f32)                       # (TB, H)

    # Final value projection, zero-padded to 128 output lanes (lane-dense store).
    out = jnp.dot(weighted.astype(bf16), wv_ref[...],
                  preferred_element_type=f32) + bv_ref[...]              # (TB, 128)
    out_ref[...] = out.astype(out_ref.dtype)


def init_params(key, h_size, dtype=jnp.float32):
    """Deterministic init mimicking nn.Linear default (uniform +-1/sqrt(h))."""
    ks = jax.random.split(key, 6)
    bound = 1.0 / jnp.sqrt(jnp.float32(h_size))

    def u(k, shape):
        return jax.random.uniform(k, shape, dtype, minval=-bound, maxval=bound)

    return {
        "wq": u(ks[0], (h_size, h_size)), "bq": u(ks[1], (h_size,)),
        "wk": u(ks[2], (h_size, h_size)), "bk": u(ks[3], (h_size,)),
        "wv": u(ks[4], (h_size, h_size)), "bv": u(ks[5], (h_size,)),
    }


def self_attention(target, neighs, kernels, params, *, block_b=1024):
    B, K, H = neighs.shape
    KH = K * H
    OUT_LANES = 128
    f32, bf16 = jnp.float32, jnp.bfloat16
    scale = 1.0 / float(H) ** 0.5

    wq = params["wq"].astype(f32); bq = params["bq"].astype(f32)
    wk = params["wk"].astype(f32); bk = params["bk"].astype(f32)
    wv = params["wv"].astype(f32); bv = params["bv"].astype(f32)

    # ---- Algebraic folds (in f32, once, outside the kernel). ----
    ws = (wq.T @ wk) * scale                                    # (H, H)
    bs = (bq @ wk) * scale                                      # (H,)
    wc = (wq.T @ bk) * scale                                    # (H,)
    cc = jnp.dot(bq, bk) * scale                                # scalar

    ws_big = jnp.tile(ws, (1, K)).astype(bf16)                  # (H, KH)
    bs_big = jnp.tile(bs.reshape(1, H), (1, K)).astype(f32)     # (1, KH)
    wc_mat = jnp.tile(wc.reshape(H, 1), (1, K)).astype(bf16)    # (H, K)
    cc_row = jnp.broadcast_to(cc, (1, K)).astype(f32)           # (1, K)

    eye_k = jnp.eye(K, dtype=f32)
    eye_h = jnp.eye(H, dtype=f32)
    sel_score = jnp.kron(eye_k, jnp.ones((H, 1), f32)).astype(bf16)    # (KH, K)
    sel_expand = jnp.kron(eye_k, jnp.ones((1, H), f32)).astype(bf16)   # (K, KH)
    sel_gather = jnp.kron(jnp.ones((K, 1), f32), eye_h).astype(bf16)   # (KH, H)

    # Value projection (applied after the weighted sum), lane-padded to 128 cols.
    wv_pad = jnp.zeros((H, OUT_LANES), f32).at[:, :H].set(wv.T).astype(bf16)
    bv_pad = jnp.zeros((1, OUT_LANES), f32).at[0, :H].set(bv)

    # ---- Batch tiling. ----
    tb = min(block_b, _round_up(B, 16))
    tb = _round_up(tb, 16)
    # Prefer >=2 grid tiles so v7x's two TensorCores both get work.
    if tb > 16 and _round_up(B, tb) // tb < 2:
        tb = _round_up((tb + 1) // 2, 16)
    b_pad = _round_up(B, tb)
    pad = b_pad - B

    tgt = target.astype(bf16)
    ngh = neighs.reshape(B, KH).astype(bf16)
    ker = kernels.astype(bf16)
    if pad:
        tgt = jnp.pad(tgt, ((0, pad), (0, 0)))
        ngh = jnp.pad(ngh, ((0, pad), (0, 0)))
        ker = jnp.pad(ker, ((0, pad), (0, 0)))

    grid = (b_pad // tb,)

    flops_per_row = 2 * (H * KH + H * K + KH * K + K * KH + KH * H + H * OUT_LANES)
    bytes_accessed = (
        tgt.size * 2 + ngh.size * 2 + ker.size * 2 + b_pad * OUT_LANES * 2
        + (ws_big.size + wc_mat.size + sel_score.size + sel_expand.size
           + sel_gather.size + wv_pad.size) * 2
        + (bs_big.size + cc_row.size + bv_pad.size) * 4)
    cost = pl.CostEstimate(flops=int(b_pad * flops_per_row),
                           transcendentals=int(b_pad * (K + 1)),
                           bytes_accessed=int(bytes_accessed))

    out = pl.pallas_call(
        _self_attention_kernel,
        out_shape=jax.ShapeDtypeStruct((b_pad, OUT_LANES), bf16),
        grid_spec=pltpu.PrefetchScalarGridSpec(
            num_scalar_prefetch=0,
            grid=grid,
            in_specs=[
                pl.BlockSpec((tb, H), lambda i: (i, 0)),            # target
                pl.BlockSpec((tb, KH), lambda i: (i, 0)),           # neighs (flat)
                pl.BlockSpec((tb, K), lambda i: (i, 0)),            # kernels
                pl.BlockSpec((H, KH), lambda i: (0, 0)),            # ws_big
                pl.BlockSpec((1, KH), lambda i: (0, 0)),            # bs_big
                pl.BlockSpec((H, K), lambda i: (0, 0)),             # wc_mat
                pl.BlockSpec((1, K), lambda i: (0, 0)),             # cc_row
                pl.BlockSpec((KH, K), lambda i: (0, 0)),            # sel_score
                pl.BlockSpec((K, KH), lambda i: (0, 0)),            # sel_expand
                pl.BlockSpec((KH, H), lambda i: (0, 0)),            # sel_gather
                pl.BlockSpec((H, OUT_LANES), lambda i: (0, 0)),     # wv_pad
                pl.BlockSpec((1, OUT_LANES), lambda i: (0, 0)),     # bv_pad
            ],
            out_specs=pl.BlockSpec((tb, OUT_LANES), lambda i: (i, 0)),
        ),
        compiler_params=pltpu.CompilerParams(
            dimension_semantics=("parallel",),
            vmem_limit_bytes=48 * 1024 * 1024),
        cost_estimate=cost,
    )(tgt, ngh, ker, ws_big, bs_big, wc_mat, cc_row,
      sel_score, sel_expand, sel_gather, wv_pad, bv_pad)

    return out[:B, :H].astype(target.dtype)


def self_attention_ref(target, neighs, kernels, params):
    """Pure-JAX (f32) reference of the PyTorch forward, for verification."""
    H = target.shape[-1]
    q = target @ params["wq"].T + params["bq"]                       # (B, H)
    keys = neighs @ params["wk"].T + params["bk"]                    # (B, K, H)
    values = neighs @ params["wv"].T + params["bv"]                  # (B, K, H)
    attn = jnp.einsum("bh,bkh->bk", q, keys) / jnp.sqrt(jnp.float32(H))
    attn = attn * kernels
    attn = jax.nn.softmax(attn, axis=-1)
    return jnp.einsum("bk,bkh->bh", attn, values)


if __name__ == "__main__":
    B, K, H = 2, 8, 32
    root = jax.random.PRNGKey(0)
    k_t, k_n, k_k, k_p = jax.random.split(root, 4)

    target = jax.random.normal(k_t, (B, H), jnp.float32)
    neighs = jax.random.normal(k_n, (B, K, H), jnp.float32)
    kernels = jax.random.uniform(k_k, (B, K), jnp.float32)
    params = init_params(k_p, H)

    out = jax.block_until_ready(self_attention(target, neighs, kernels, params))
    ref = self_attention_ref(target, neighs, kernels, params)
    assert out.shape == (B, H)
    # bf16 matmul inputs / output with f32 accumulation => loose tolerance.
    assert jnp.allclose(out, ref, atol=2e-2, rtol=2e-2), "mismatch vs reference"

    # Exercise the batch grid (multiple tiles + batch padding).
    B2 = 40
    k_t2, k_n2, k_k2 = jax.random.split(jax.random.PRNGKey(1), 3)
    target2 = jax.random.normal(k_t2, (B2, H), jnp.float32)
    neighs2 = jax.random.normal(k_n2, (B2, K, H), jnp.float32)
    kernels2 = jax.random.uniform(k_k2, (B2, K), jnp.float32)
    out2 = jax.block_until_ready(
        self_attention(target2, neighs2, kernels2, params, block_b=16))
    ref2 = self_attention_ref(target2, neighs2, kernels2, params)
    assert out2.shape == (B2, H)
    assert jnp.allclose(out2, ref2, atol=2e-2, rtol=2e-2), "mismatch vs reference (tiled)"

    print("KERNEL_OK")
</pallas_src>

<mosaic_0001>
module attributes {stable_mosaic.version = 11 : i64} {
  func.func @_self_attention_kernel(%arg0: i32, %arg1: memref<16x32xbf16, #tpu.memory_space<vmem>>, %arg2: memref<16x256xbf16, #tpu.memory_space<vmem>>, %arg3: memref<16x8xbf16, #tpu.memory_space<vmem>>, %arg4: memref<32x256xbf16, #tpu.memory_space<vmem>>, %arg5: memref<1x256xf32, #tpu.memory_space<vmem>>, %arg6: memref<32x8xbf16, #tpu.memory_space<vmem>>, %arg7: memref<1x8xf32, #tpu.memory_space<vmem>>, %arg8: memref<256x8xbf16, #tpu.memory_space<vmem>>, %arg9: memref<8x256xbf16, #tpu.memory_space<vmem>>, %arg10: memref<256x32xbf16, #tpu.memory_space<vmem>>, %arg11: memref<32x128xbf16, #tpu.memory_space<vmem>>, %arg12: memref<1x128xf32, #tpu.memory_space<vmem>>, %arg13: memref<16x128xbf16, #tpu.memory_space<vmem>>) attributes {dimension_semantics = [#tpu.dimension_semantics<parallel>], iteration_bounds = array<i64: 1>, scalar_prefetch = 0 : i64, scratch_operands = 0 : i64, tpu.core_type = #tpu.core_type<tc>, window_params = [{transform_indices = @transform_0, window_bounds = array<i64: 16, 32>}, {transform_indices = @transform_1, window_bounds = array<i64: 16, 256>}, {transform_indices = @transform_2, window_bounds = array<i64: 16, 8>}, {pipeline_mode = #tpu.pipeline_mode<synchronous>, transform_indices = @transform_3, window_bounds = array<i64: 32, 256>}, {pipeline_mode = #tpu.pipeline_mode<synchronous>, transform_indices = @transform_4, window_bounds = array<i64: 1, 256>}, {pipeline_mode = #tpu.pipeline_mode<synchronous>, transform_indices = @transform_5, window_bounds = array<i64: 32, 8>}, {pipeline_mode = #tpu.pipeline_mode<synchronous>, transform_indices = @transform_6, window_bounds = array<i64: 1, 8>}, {pipeline_mode = #tpu.pipeline_mode<synchronous>, transform_indices = @transform_7, window_bounds = array<i64: 256, 8>}, {pipeline_mode = #tpu.pipeline_mode<synchronous>, transform_indices = @transform_8, window_bounds = array<i64: 8, 256>}, {pipeline_mode = #tpu.pipeline_mode<synchronous>, transform_indices = @transform_9, window_bounds = array<i64: 256, 32>}, {pipeline_mode = #tpu.pipeline_mode<synchronous>, transform_indices = @transform_10, window_bounds = array<i64: 32, 128>}, {pipeline_mode = #tpu.pipeline_mode<synchronous>, transform_indices = @transform_11, window_bounds = array<i64: 1, 128>}, {transform_indices = @transform_12, window_bounds = array<i64: 16, 128>}]} {
    %c0 = arith.constant 0 : index
    %c0_0 = arith.constant 0 : index
    %0 = vector.load %arg1[%c0, %c0_0] : memref<16x32xbf16, #tpu.memory_space<vmem>>, vector<16x32xbf16>
    %c0_1 = arith.constant 0 : index
    %c0_2 = arith.constant 0 : index
    %1 = vector.load %arg2[%c0_1, %c0_2] : memref<16x256xbf16, #tpu.memory_space<vmem>>, vector<16x256xbf16>
    %c0_3 = arith.constant 0 : index
    %c0_4 = arith.constant 0 : index
    %2 = vector.load %arg4[%c0_3, %c0_4] : memref<32x256xbf16, #tpu.memory_space<vmem>>, vector<32x256xbf16>
    %cst = arith.constant dense<0.000000e+00> : vector<16x256xf32>
    %3 = tpu.matmul %0, %2, %cst {dimension_numbers = #tpu.dot_dimension_numbers<[1], [0], [0], [1], [0, 0, 1, 1], [], []>} : vector<16x32xbf16>, vector<32x256xbf16>, vector<16x256xf32> -> vector<16x256xf32>
    %c0_5 = arith.constant 0 : index
    %c0_6 = arith.constant 0 : index
    %4 = vector.load %arg5[%c0_5, %c0_6] : memref<1x256xf32, #tpu.memory_space<vmem>>, vector<1x256xf32>
    %5 = vector.broadcast %4 : vector<1x256xf32> to vector<16x256xf32>
    %6 = arith.addf %3, %5 : vector<16x256xf32>
    %c0_7 = arith.constant 0 : index
    %c0_8 = arith.constant 0 : index
    %7 = vector.load %arg6[%c0_7, %c0_8] : memref<32x8xbf16, #tpu.memory_space<vmem>>, vector<32x8xbf16>
    %cst_9 = arith.constant dense<0.000000e+00> : vector<16x8xf32>
    %8 = tpu.matmul %0, %7, %cst_9 {dimension_numbers = #tpu.dot_dimension_numbers<[1], [0], [0], [1], [0, 0, 1, 1], [], []>} : vector<16x32xbf16>, vector<32x8xbf16>, vector<16x8xf32> -> vector<16x8xf32>
    %c0_10 = arith.constant 0 : index
    %c0_11 = arith.constant 0 : index
    %9 = vector.load %arg7[%c0_10, %c0_11] : memref<1x8xf32, #tpu.memory_space<vmem>>, vector<1x8xf32>
    %10 = vector.broadcast %9 : vector<1x8xf32> to vector<16x8xf32>
    %11 = arith.addf %8, %10 : vector<16x8xf32>
    %12 = arith.truncf %6 : vector<16x256xf32> to vector<16x256xbf16>
    %13 = arith.mulf %12, %1 : vector<16x256xbf16>
    %c0_12 = arith.constant 0 : index
    %c0_13 = arith.constant 0 : index
    %14 = vector.load %arg8[%c0_12, %c0_13] : memref<256x8xbf16, #tpu.memory_space<vmem>>, vector<256x8xbf16>
    %cst_14 = arith.constant dense<0.000000e+00> : vector<16x8xf32>
    %15 = tpu.matmul %13, %14, %cst_14 {dimension_numbers = #tpu.dot_dimension_numbers<[1], [0], [0], [1], [0, 0, 1, 1], [], []>} : vector<16x256xbf16>, vector<256x8xbf16>, vector<16x8xf32> -> vector<16x8xf32>
    %16 = arith.addf %15, %11 : vector<16x8xf32>
    %c0_15 = arith.constant 0 : index
    %c0_16 = arith.constant 0 : index
    %17 = vector.load %arg3[%c0_15, %c0_16] : memref<16x8xbf16, #tpu.memory_space<vmem>>, vector<16x8xbf16>
    %18 = arith.extf %17 : vector<16x8xbf16> to vector<16x8xf32>
    %19 = arith.mulf %16, %18 : vector<16x8xf32>
    %cst_17 = arith.constant dense<0xFF800000> : vector<16xf32>
    %20 = vector.multi_reduction <maximumf>, %19, %cst_17 [1] : vector<16x8xf32> to vector<16xf32>
    %21 = vector.shape_cast %20 : vector<16xf32> to vector<16x1xf32>
    %22 = vector.broadcast %21 : vector<16x1xf32> to vector<16x8xf32>
    %23 = arith.subf %19, %22 : vector<16x8xf32>
    %24 = math.exp %23 : vector<16x8xf32>
    %cst_18 = arith.constant dense<0.000000e+00> : vector<16xf32>
    %25 = vector.multi_reduction <add>, %24, %cst_18 [1] : vector<16x8xf32> to vector<16xf32>
    %26 = vector.shape_cast %25 : vector<16xf32> to vector<16x1xf32>
    %27 = tpu.reciprocal %26 {approx = true} : vector<16x1xf32> -> vector<16x1xf32>
    %28 = vector.broadcast %27 : vector<16x1xf32> to vector<16x8xf32>
    %29 = arith.mulf %24, %28 : vector<16x8xf32>
    %30 = arith.truncf %29 : vector<16x8xf32> to vector<16x8xbf16>
    %c0_19 = arith.constant 0 : index
    %c0_20 = arith.constant 0 : index
    %31 = vector.load %arg9[%c0_19, %c0_20] : memref<8x256xbf16, #tpu.memory_space<vmem>>, vector<8x256xbf16>
    %cst_21 = arith.constant dense<0.000000e+00> : vector<16x256xf32>
    %32 = tpu.matmul %30, %31, %cst_21 {dimension_numbers = #tpu.dot_dimension_numbers<[1], [0], [0], [1], [0, 0, 1, 1], [], []>} : vector<16x8xbf16>, vector<8x256xbf16>, vector<16x256xf32> -> vector<16x256xf32>
    %33 = arith.truncf %32 : vector<16x256xf32> to vector<16x256xbf16>
    %34 = arith.mulf %33, %1 : vector<16x256xbf16>
    %c0_22 = arith.constant 0 : index
    %c0_23 = arith.constant 0 : index
    %35 = vector.load %arg10[%c0_22, %c0_23] : memref<256x32xbf16, #tpu.memory_space<vmem>>, vector<256x32xbf16>
    %cst_24 = arith.constant dense<0.000000e+00> : vector<16x32xf32>
    %36 = tpu.matmul %34, %35, %cst_24 {dimension_numbers = #tpu.dot_dimension_numbers<[1], [0], [0], [1], [0, 0, 1, 1], [], []>} : vector<16x256xbf16>, vector<256x32xbf16>, vector<16x32xf32> -> vector<16x32xf32>
    %37 = arith.truncf %36 : vector<16x32xf32> to vector<16x32xbf16>
    %c0_25 = arith.constant 0 : index
    %c0_26 = arith.constant 0 : index
    %38 = vector.load %arg11[%c0_25, %c0_26] : memref<32x128xbf16, #tpu.memory_space<vmem>>, vector<32x128xbf16>
    %cst_27 = arith.constant dense<0.000000e+00> : vector<16x128xf32>
    %39 = tpu.matmul %37, %38, %cst_27 {dimension_numbers = #tpu.dot_dimension_numbers<[1], [0], [0], [1], [0, 0, 1, 1], [], []>} : vector<16x32xbf16>, vector<32x128xbf16>, vector<16x128xf32> -> vector<16x128xf32>
    %c0_28 = arith.constant 0 : index
    %c0_29 = arith.constant 0 : index
    %40 = vector.load %arg12[%c0_28, %c0_29] : memref<1x128xf32, #tpu.memory_space<vmem>>, vector<1x128xf32>
    %41 = vector.broadcast %40 : vector<1x128xf32> to vector<16x128xf32>
    %42 = arith.addf %39, %41 : vector<16x128xf32>
    %43 = arith.truncf %42 : vector<16x128xf32> to vector<16x128xbf16>
    %c0_30 = arith.constant 0 : index
    %c0_31 = arith.constant 0 : index
    %44 = vector.load %arg13[%c0_30, %c0_31] : memref<16x128xbf16, #tpu.memory_space<vmem>>, vector<16x128xbf16>
    tpu.vector_store %arg13[%c0_30, %c0_31], %43 {strides = array<i32>} : memref<16x128xbf16, #tpu.memory_space<vmem>>, vector<16x128xbf16>,
    return
  }
  func.func @transform_0(%arg0: i32) -> (i32, i32) {
    %c0_i32 = arith.constant 0 : i32
    %c0_i32_0 = arith.constant 0 : i32
    return %arg0, %c0_i32 : i32, i32
  }
  func.func @transform_1(%arg0: i32) -> (i32, i32) {
    %c0_i32 = arith.constant 0 : i32
    %c0_i32_0 = arith.constant 0 : i32
    return %arg0, %c0_i32 : i32, i32
  }
  func.func @transform_2(%arg0: i32) -> (i32, i32) {
    %c0_i32 = arith.constant 0 : i32
    %c0_i32_0 = arith.constant 0 : i32
    return %arg0, %c0_i32 : i32, i32
  }
  func.func @transform_3(%arg0: i32) -> (i32, i32) {
    %c0_i32 = arith.constant 0 : i32
    %c0_i32_0 = arith.constant 0 : i32
    %c0_i32_1 = arith.constant 0 : i32
    return %c0_i32, %c0_i32_0 : i32, i32
  }
  func.func @transform_4(%arg0: i32) -> (i32, i32) {
    %c0_i32 = arith.constant 0 : i32
    %c0_i32_0 = arith.constant 0 : i32
    %c0_i32_1 = arith.constant 0 : i32
    return %c0_i32, %c0_i32_0 : i32, i32
  }
  func.func @transform_5(%arg0: i32) -> (i32, i32) {
    %c0_i32 = arith.constant 0 : i32
    %c0_i32_0 = arith.constant 0 : i32
    %c0_i32_1 = arith.constant 0 : i32
    return %c0_i32, %c0_i32_0 : i32, i32
  }
  func.func @transform_6(%arg0: i32) -> (i32, i32) {
    %c0_i32 = arith.constant 0 : i32
    %c0_i32_0 = arith.constant 0 : i32
    %c0_i32_1 = arith.constant 0 : i32
    return %c0_i32, %c0_i32_0 : i32, i32
  }
  func.func @transform_7(%arg0: i32) -> (i32, i32) {
    %c0_i32 = arith.constant 0 : i32
    %c0_i32_0 = arith.constant 0 : i32
    %c0_i32_1 = arith.constant 0 : i32
    return %c0_i32, %c0_i32_0 : i32, i32
  }
  func.func @transform_8(%arg0: i32) -> (i32, i32) {
    %c0_i32 = arith.constant 0 : i32
    %c0_i32_0 = arith.constant 0 : i32
    %c0_i32_1 = arith.constant 0 : i32
    return %c0_i32, %c0_i32_0 : i32, i32
  }
  func.func @transform_9(%arg0: i32) -> (i32, i32) {
    %c0_i32 = arith.constant 0 : i32
    %c0_i32_0 = arith.constant 0 : i32
    %c0_i32_1 = arith.constant 0 : i32
    return %c0_i32, %c0_i32_0 : i32, i32
  }
  func.func @transform_10(%arg0: i32) -> (i32, i32) {
    %c0_i32 = arith.constant 0 : i32
    %c0_i32_0 = arith.constant 0 : i32
    %c0_i32_1 = arith.constant 0 : i32
    return %c0_i32, %c0_i32_0 : i32, i32
  }
  func.func @transform_11(%arg0: i32) -> (i32, i32) {
    %c0_i32 = arith.constant 0 : i32
    %c0_i32_0 = arith.constant 0 : i32
    %c0_i32_1 = arith.constant 0 : i32
    return %c0_i32, %c0_i32_0 : i32, i32
  }
  func.func @transform_12(%arg0: i32) -> (i32, i32) {
    %c0_i32 = arith.constant 0 : i32
    %c0_i32_0 = arith.constant 0 : i32
    return %arg0, %c0_i32 : i32, i32
  }
}

</mosaic_0001>

<llo_original>
// kernel: tpu_custom_call.1
$region0: #{tpu_custom_call.1}
  #allocation0 [shape = 'u32[]', space=smem, size = 0x4, offset = 0x4, fixed_abs, tag = 'smem constant byte address 0x4 - core index']
  #allocation1 [shape = 'u32[144,128]{1,0:T(1,128)}', space=vmem, size = 0x12000, scoped, tag = 'internal scratch']
  %s0 = inlined_call_operand.vmem [shape: bf16[16,32], index: 0, kind: input, shape index: {}]
  %s1 = inlined_call_operand.vmem [shape: bf16[16,256], index: 1, kind: input, shape index: {}]
  %s2 = inlined_call_operand.vmem [shape: bf16[16,8], index: 2, kind: input, shape index: {}]
  %s3 = inlined_call_operand.vmem [shape: bf16[32,256], index: 3, kind: input, shape index: {}]
  %s4 = inlined_call_operand.vmem [shape: f32[1,256], index: 4, kind: input, shape index: {}]
  %s5 = inlined_call_operand.vmem [shape: bf16[32,8], index: 5, kind: input, shape index: {}]
  %s6 = inlined_call_operand.vmem [shape: f32[1,8], index: 6, kind: input, shape index: {}]
  %s7 = inlined_call_operand.vmem [shape: bf16[256,8], index: 7, kind: input, shape index: {}]
  %s8 = inlined_call_operand.vmem [shape: bf16[8,256], index: 8, kind: input, shape index: {}]
  %s9 = inlined_call_operand.vmem [shape: bf16[256,32], index: 9, kind: input, shape index: {}]
  %s10 = inlined_call_operand.vmem [shape: bf16[32,128], index: 10, kind: input, shape index: {}]
  %s11 = inlined_call_operand.vmem [shape: f32[1,128], index: 11, kind: input, shape index: {}]
  %s12 = inlined_call_operand.hbm [shape: bf16[16,128], index: 12, kind: output, shape index: {}]
  %s13 = sld [smem:[#allocation0]]
  $region58: #{tpu_custom_call.1} parent=0
    _
  %s15 = ssub.s32 1, %s13
  %s16 = scalar_select 0, %s15, %s13
  $region1: #{tpu_custom_call.1} parent=0
    #allocation2 [shape = 'u8[4096]{0}', space=vmem, size = 0x1000, scoped, tag = 'output window, operand 0, single buffered']
    #allocation3 [shape = 's32[1]{0}', space=sflag, size = 0x4, scoped, tag = 'scoped memory for tpu_custom_call.1']
    %17 = vsyncpa [#allocation3], 0
    // Predicated region
    $region2: #{tpu_custom_call.1} parent=1 // pred_check
      _
    $region3: #{tpu_custom_call.1} parent=1 // pred_check_branch
      %19 = sbr.rel (0) target = $region5
    $region4: #{tpu_custom_call.1} parent=1 // pred_region
      _
    $region5: #{tpu_custom_call.1} parent=1 // pred_fallthru
      _
    // Predicated region
    $region6: #{tpu_custom_call.1} parent=1 // pred_check
      _
    $region7: #{tpu_custom_call.1} parent=1 // pred_check_branch
      %21 = sbr.rel (0) target = $region9
    $region8: #{tpu_custom_call.1} parent=1 // pred_region
      _
    $region9: #{tpu_custom_call.1} parent=1 // pred_fallthru
      _
    // Predicated region
    $region10: #{tpu_custom_call.1} parent=1 // pred_check
      _
    $region11: #{tpu_custom_call.1} parent=1 // pred_check_branch
      %23 = sbr.rel (0) target = $region13
    $region12: #{tpu_custom_call.1} parent=1 // pred_region
      _
    $region13: #{tpu_custom_call.1} parent=1 // pred_fallthru
      _
    // Predicated region
    $region14: #{tpu_custom_call.1} parent=1 // pred_check
      _
    $region15: #{tpu_custom_call.1} parent=1 // pred_check_branch
      %25 = sbr.rel (0) target = $region17
    $region16: #{tpu_custom_call.1} parent=1 // pred_region
      _
    $region17: #{tpu_custom_call.1} parent=1 // pred_fallthru
      _
    // Predicated region
    $region18: #{tpu_custom_call.1} parent=1 // pred_check
      _
    $region19: #{tpu_custom_call.1} parent=1 // pred_check_branch
      %27 = sbr.rel (0) target = $region21
    $region20: #{tpu_custom_call.1} parent=1 // pred_region
      _
    $region21: #{tpu_custom_call.1} parent=1 // pred_fallthru
      _
    // Predicated region
    $region22: #{tpu_custom_call.1} parent=1 // pred_check
      _
    $region23: #{tpu_custom_call.1} parent=1 // pred_check_branch
      %29 = sbr.rel (0) target = $region25
    $region24: #{tpu_custom_call.1} parent=1 // pred_region
      _
    $region25: #{tpu_custom_call.1} parent=1 // pred_fallthru
      _
    // Predicated region
    $region26: #{tpu_custom_call.1} parent=1 // pred_check
      _
    $region27: #{tpu_custom_call.1} parent=1 // pred_check_branch
      %31 = sbr.rel (0) target = $region29
    $region28: #{tpu_custom_call.1} parent=1 // pred_region
      _
    $region29: #{tpu_custom_call.1} parent=1 // pred_fallthru
      _
    // Predicated region
    $region30: #{tpu_custom_call.1} parent=1 // pred_check
      _
    $region31: #{tpu_custom_call.1} parent=1 // pred_check_branch
      %33 = sbr.rel (0) target = $region33
    $region32: #{tpu_custom_call.1} parent=1 // pred_region
      _
    $region33: #{tpu_custom_call.1} parent=1 // pred_fallthru
      _
    // Predicated region
    $region34: #{tpu_custom_call.1} parent=1 // pred_check
      _
    $region35: #{tpu_custom_call.1} parent=1 // pred_check_branch
      %35 = sbr.rel (0) target = $region37
    $region36: #{tpu_custom_call.1} parent=1 // pred_region
      _
    $region37: #{tpu_custom_call.1} parent=1 // pred_fallthru
      _
    // Predicated region
    $region38: #{tpu_custom_call.1} parent=1 // pred_check
      _
    $region39: #{tpu_custom_call.1} parent=1 // pred_check_branch
      %37 = sbr.rel (0) target = $region41
    $region40: #{tpu_custom_call.1} parent=1 // pred_region
      _
    $region41: #{tpu_custom_call.1} parent=1 // pred_fallthru
      _
    // Predicated region
    $region42: #{tpu_custom_call.1} parent=1 // pred_check
      _
    $region43: #{tpu_custom_call.1} parent=1 // pred_check_branch
      %39 = sbr.rel (0) target = $region45
    $region44: #{tpu_custom_call.1} parent=1 // pred_region
      _
    $region45: #{tpu_custom_call.1} parent=1 // pred_fallthru
      _
    // Predicated region
    $region46: #{tpu_custom_call.1} parent=1 // pred_check
      _
    $region47: #{tpu_custom_call.1} parent=1 // pred_check_branch
      %41 = sbr.rel (0) target = $region49
    $region48: #{tpu_custom_call.1} parent=1 // pred_region
      _
    $region49: #{tpu_custom_call.1} parent=1 // pred_fallthru
      _
    %v43 = vld [vmem:[%s0] sm:$0xf]
    %v44 = vld [vmem:[%s0 + $0x4] sm:$0xf]
    %v45 = vld [vmem:[%s1] sm:$0xff]
    %v46 = vld [vmem:[%s1 + $0x8] sm:$0xff]
    %v47 = vld [vmem:[%s3] sm:$0xff]
    %v48 = vld [vmem:[%s3 + $0x8] sm:$0xff]
    %v49 = vld [vmem:[%s3 + $0x10] sm:$0xff]
    %v50 = vld [vmem:[%s3 + $0x18] sm:$0xff]
    %v51 = vld [vmem:[%s4] sm:$0x3]
    %v53 = vlaneseq
    %v54 = vshrl.u32 %v53, 7
    %v55 = vsub.s32 0, %v54
    %v56 = vrot.slane %v51, %v55
    %v57 = vlaneseq
    %v58 = vshrl.u32 %v57, 7
    %v59 = vsub.s32 1, %v58
    %v60 = vrot.slane %v51, %v59
    %v65 = vunpack.c.l.b16 %v43
    %v66 = vunpack.c.l.b16 %v44
    %v67 = vpack.c.b16 %v66, %v65
    %v72 = vunpack.c.l.b16 %v47
    %v73 = vunpack.c.h.b16 %v47
    %v74 = vunpack.c.l.b16 %v48
    %v75 = vunpack.c.h.b16 %v48
    %v76 = vunpack.c.l.b16 %v49
    %v77 = vunpack.c.h.b16 %v49
    %v78 = vunpack.c.l.b16 %v50
    %v79 = vunpack.c.h.b16 %v50
    %v80 = vpack.c.b16 %v74, %v72
    %v81 = vpack.c.b16 %v75, %v73
    %v82 = vpack.c.b16 %v78, %v76
    %v83 = vpack.c.b16 %v79, %v77
    %vm88 = vcmask 261120
    %v90 = vsel %vm88, %v67, 0
    %92 = vmatprep.subr.bf16.mxu0 0
    %93 = vmatpush1.bf16.msra.mxu0 0
    %94 = vmatprep.subr.bf16.mxu0 0
    %95 = vmatpush1.bf16.msra.mxu0 0
    %96 = vmatprep.subr.bf16.mxu0 0
    %97 = vmatpush1.bf16.msra.mxu0 0
    %98 = vmatprep.subr.bf16.mxu0 0
    %99 = vmatpush1.bf16.msra.mxu0 0
    %100 = vmatprep.subr.bf16.mxu0 0
    %101 = vmatpush1.bf16.msra.mxu0 0
    %102 = vmatprep.subr.bf16.mxu0 0
    %103 = vmatpush1.bf16.msra.mxu0 0
    %104 = vmatprep.subr.bf16.mxu0 %v83
    %105 = vmatpush1.bf16.msra.mxu0 %v82
    %106 = vmatprep.subr.bf16.mxu0 %v81
    %107 = vmatpush1.bf16.msra.mxu0 %v80
    %108 = vmatprep.subr.bf16.mxu0 0
    %109 = vmatpush2.bf16.msra.mxu0 0
    %110 = vmatprep.subr.bf16.mxu0 0
    %111 = vmatpush2.bf16.msra.mxu0 0
    %112 = vmatprep.subr.bf16.mxu0 0
    %113 = vmatpush2.bf16.msra.mxu0 0
    %114 = vmatprep.subr.bf16.mxu0 0
    %115 = vmatpush2.bf16.msra.mxu0 0
    %116 = vmatprep.subr.bf16.mxu0 0
    %117 = vmatpush2.bf16.msra.mxu0 0
    %118 = vmatprep.subr.bf16.mxu0 0
    %119 = vmatpush2.bf16.msra.mxu0 0
    %120 = vmatprep.subr.bf16.mxu0 0
    %121 = vmatpush2.bf16.msra.mxu0 0
    %122 = vmatprep.subr.bf16.mxu0 0
    %123 = vmatpush2.bf16.msra.mxu0 0
    %124 = vmatprep.mubr.bf16.mxu0 0
    %125 = vmatmul.mubr.bf16.gmra.mxu0 %v90
    %v126 = vpop.f32.mrf.mxu0
    %v127 = vadd.f32 %v56, %v126
    %v128 = vpop.f32.mrf.mxu0
    %v129 = vadd.f32 %v60, %v128
    %v130 = vpop.f32.mrf.mxu0
    %v131 = vadd.f32 %v56, %v130
    %v132 = vpop.f32.mrf.mxu0
    %v133 = vadd.f32 %v60, %v132
    %134 = vdwg.mxu0
    %v135 = vld [vmem:[%s5] sm:$0xf]
    %v136 = vld [vmem:[%s5 + $0x4] sm:$0xf]
    %v137 = vld [vmem:[%s5 + $0x8] sm:$0xf]
    %v138 = vld [vmem:[%s5 + $0xc] sm:$0xf]
    %v139 = vld [vmem:[%s6] sm:$0x1]
    %v141 = vlaneseq
    %v142 = vshrl.u32 %v141, 7
    %v143 = vsub.s32 0, %v142
    %v144 = vrot.slane %v139, %v143
    %v150 = vunpack.c.l.b16 %v135
    %v151 = vunpack.c.l.b16 %v136
    %v152 = vunpack.c.l.b16 %v137
    %v153 = vunpack.c.l.b16 %v138
    %v154 = vpack.c.b16 %v151, %v150
    %v155 = vpack.c.b16 %v153, %v152
    %158 = vmatprep.subr.bf16.mxu0 0
    %159 = vmatpush1.bf16.msra.mxu0 0
    %160 = vmatprep.subr.bf16.mxu0 0
    %161 = vmatpush1.bf16.msra.mxu0 0
    %162 = vmatprep.subr.bf16.mxu0 0
    %163 = vmatpush1.bf16.msra.mxu0 0
    %164 = vmatprep.subr.bf16.mxu0 0
    %165 = vmatpush1.bf16.msra.mxu0 0
    %166 = vmatprep.subr.bf16.mxu0 0
    %167 = vmatpush1.bf16.msra.mxu0 0
    %168 = vmatprep.subr.bf16.mxu0 0
    %169 = vmatpush1.bf16.msra.mxu0 0
    %170 = vmatprep.subr.bf16.mxu0 0
    %171 = vmatpush1.bf16.msra.mxu0 %v155
    %172 = vmatprep.subr.bf16.mxu0 0
    %173 = vmatpush1.bf16.msra.mxu0 %v154
    %174 = vmatprep.subr.bf16.mxu0 0
    %175 = vmatpush2.bf16.msra.mxu0 0
    %176 = vmatprep.subr.bf16.mxu0 0
    %177 = vmatpush2.bf16.msra.mxu0 0
    %178 = vmatprep.subr.bf16.mxu0 0
    %179 = vmatpush2.bf16.msra.mxu0 0
    %180 = vmatprep.subr.bf16.mxu0 0
    %181 = vmatpush2.bf16.msra.mxu0 0
    %182 = vmatprep.subr.bf16.mxu0 0
    %183 = vmatpush2.bf16.msra.mxu0 0
    %184 = vmatprep.subr.bf16.mxu0 0
    %185 = vmatpush2.bf16.msra.mxu0 0
    %186 = vmatprep.subr.bf16.mxu0 0
    %187 = vmatpush2.bf16.msra.mxu0 0
    %188 = vmatprep.subr.bf16.mxu0 0
    %189 = vmatpush2.bf16.msra.mxu0 0
    %190 = vmatprep.mubr.bf16.mxu0 0
    %191 = vmatmul.mubr.bf16.gmra.mxu0 %v90
    %v192 = vpop.f32.mrf.mxu0
    %v193 = vadd.f32 %v144, %v192
    %v194 = vpop.f32.mrf.mxu0
    %v195 = vpop.f32.mrf.mxu0
    %v196 = vadd.f32 %v144, %v195
    %v197 = vpop.f32.mrf.mxu0
    %198 = vdwg.mxu0
    %v199 = vpack.c.bf16 %v131, %v127
    %v200 = vpack.c.bf16 %v133, %v129
    %v203 = vunpack.c.l.b16 %v45
    %v204 = vunpack.c.h.b16 %v45
    %v205 = vunpack.c.l.b16 %v46
    %v206 = vunpack.c.h.b16 %v46
    %v207 = vpack.c.b16 %v205, %v203
    %v208 = vpack.c.b16 %v206, %v204
    %v211 = vmul.bf16 %v199, %v207
    %v212 = vmul.bf16 %v200, %v208
    %v213 = vld [vmem:[%s7] sm:$0xf]
    %v214 = vld [vmem:[%s7 + $0x4] sm:$0xf]
    %v215 = vld [vmem:[%s7 + $0x8] sm:$0xf]
    %v216 = vld [vmem:[%s7 + $0xc] sm:$0xf]
    %v217 = vld [vmem:[%s7 + $0x10] sm:$0xf]
    %v218 = vld [vmem:[%s7 + $0x14] sm:$0xf]
    %v219 = vld [vmem:[%s7 + $0x18] sm:$0xf]
    %v220 = vld [vmem:[%s7 + $0x1c] sm:$0xf]
    %v221 = vld [vmem:[%s7 + $0x20] sm:$0xf]
    %v222 = vld [vmem:[%s7 + $0x24] sm:$0xf]
    %v223 = vld [vmem:[%s7 + $0x28] sm:$0xf]
    %v224 = vld [vmem:[%s7 + $0x2c] sm:$0xf]
    %v225 = vld [vmem:[%s7 + $0x30] sm:$0xf]
    %v226 = vld [vmem:[%s7 + $0x34] sm:$0xf]
    %v227 = vld [vmem:[%s7 + $0x38] sm:$0xf]
    %v228 = vld [vmem:[%s7 + $0x3c] sm:$0xf]
    %v229 = vld [vmem:[%s7 + $0x40] sm:$0xf]
    %v230 = vld [vmem:[%s7 + $0x44] sm:$0xf]
    %v231 = vld [vmem:[%s7 + $0x48] sm:$0xf]
    %v232 = vld [vmem:[%s7 + $0x4c] sm:$0xf]
    %v233 = vld [vmem:[%s7 + $0x50] sm:$0xf]
    %v234 = vld [vmem:[%s7 + $0x54] sm:$0xf]
    %v235 = vld [vmem:[%s7 + $0x58] sm:$0xf]
    %v236 = vld [vmem:[%s7 + $0x5c] sm:$0xf]
    %v237 = vld [vmem:[%s7 + $0x60] sm:$0xf]
    %v238 = vld [vmem:[%s7 + $0x64] sm:$0xf]
    %v239 = vld [vmem:[%s7 + $0x68] sm:$0xf]
    %v240 = vld [vmem:[%s7 + $0x6c] sm:$0xf]
    %v241 = vld [vmem:[%s7 + $0x70] sm:$0xf]
    %v242 = vld [vmem:[%s7 + $0x74] sm:$0xf]
    %v243 = vld [vmem:[%s7 + $0x78] sm:$0xf]
    %v244 = vld [vmem:[%s7 + $0x7c] sm:$0xf]
    %v277 = vunpack.c.l.b16 %v213
    %v278 = vunpack.c.l.b16 %v214
    %v279 = vunpack.c.l.b16 %v215
    %v280 = vunpack.c.l.b16 %v216
    %v281 = vunpack.c.l.b16 %v217
    %v282 = vunpack.c.l.b16 %v218
    %v283 = vunpack.c.l.b16 %v219
    %v284 = vunpack.c.l.b16 %v220
    %v285 = vunpack.c.l.b16 %v221
    %v286 = vunpack.c.l.b16 %v222
    %v287 = vunpack.c.l.b16 %v223
    %v288 = vunpack.c.l.b16 %v224
    %v289 = vunpack.c.l.b16 %v225
    %v290 = vunpack.c.l.b16 %v226
    %v291 = vunpack.c.l.b16 %v227
    %v292 = vunpack.c.l.b16 %v228
    %v293 = vunpack.c.l.b16 %v229
    %v294 = vunpack.c.l.b16 %v230
    %v295 = vunpack.c.l.b16 %v231
    %v296 = vunpack.c.l.b16 %v232
    %v297 = vunpack.c.l.b16 %v233
    %v298 = vunpack.c.l.b16 %v234
    %v299 = vunpack.c.l.b16 %v235
    %v300 = vunpack.c.l.b16 %v236
    %v301 = vunpack.c.l.b16 %v237
    %v302 = vunpack.c.l.b16 %v238
    %v303 = vunpack.c.l.b16 %v239
    %v304 = vunpack.c.l.b16 %v240
    %v305 = vunpack.c.l.b16 %v241
    %v306 = vunpack.c.l.b16 %v242
    %v307 = vunpack.c.l.b16 %v243
    %v308 = vunpack.c.l.b16 %v244
    %v309 = vpack.c.b16 %v278, %v277
    %v310 = vpack.c.b16 %v280, %v279
    %v311 = vpack.c.b16 %v282, %v281
    %v312 = vpack.c.b16 %v284, %v283
    %v313 = vpack.c.b16 %v286, %v285
    %v314 = vpack.c.b16 %v288, %v287
    %v315 = vpack.c.b16 %v290, %v289
    %v316 = vpack.c.b16 %v292, %v291
    %v317 = vpack.c.b16 %v294, %v293
    %v318 = vpack.c.b16 %v296, %v295
    %v319 = vpack.c.b16 %v298, %v297
    %v320 = vpack.c.b16 %v300, %v299
    %v321 = vpack.c.b16 %v302, %v301
    %v322 = vpack.c.b16 %v304, %v303
    %v323 = vpack.c.b16 %v306, %v305
    %v324 = vpack.c.b16 %v308, %v307
    %341 = vmatprep.subr.bf16.mxu0 0
    %342 = vmatpush1.bf16.msra.mxu0 %v316
    %343 = vmatprep.subr.bf16.mxu0 0
    %344 = vmatpush1.bf16.msra.mxu0 %v315
    %345 = vmatprep.subr.bf16.mxu0 0
    %346 = vmatpush1.bf16.msra.mxu0 %v314
    %347 = vmatprep.subr.bf16.mxu0 0
    %348 = vmatpush1.bf16.msra.mxu0 %v313
    %349 = vmatprep.subr.bf16.mxu0 0
    %350 = vmatpush1.bf16.msra.mxu0 %v312
    %351 = vmatprep.subr.bf16.mxu0 0
    %352 = vmatpush1.bf16.msra.mxu0 %v311
    %353 = vmatprep.subr.bf16.mxu0 0
    %354 = vmatpush1.bf16.msra.mxu0 %v310
    %355 = vmatprep.subr.bf16.mxu0 0
    %356 = vmatpush1.bf16.msra.mxu0 %v309
    %357 = vmatprep.subr.bf16.mxu0 0
    %358 = vmatpush2.bf16.msra.mxu0 %v324
    %359 = vmatprep.subr.bf16.mxu0 0
    %360 = vmatpush2.bf16.msra.mxu0 %v323
    %361 = vmatprep.subr.bf16.mxu0 0
    %362 = vmatpush2.bf16.msra.mxu0 %v322
    %363 = vmatprep.subr.bf16.mxu0 0
    %364 = vmatpush2.bf16.msra.mxu0 %v321
    %365 = vmatprep.subr.bf16.mxu0 0
    %366 = vmatpush2.bf16.msra.mxu0 %v320
    %367 = vmatprep.subr.bf16.mxu0 0
    %368 = vmatpush2.bf16.msra.mxu0 %v319
    %369 = vmatprep.subr.bf16.mxu0 0
    %370 = vmatpush2.bf16.msra.mxu0 %v318
    %371 = vmatprep.subr.bf16.mxu0 0
    %372 = vmatpush2.bf16.msra.mxu0 %v317
    %373 = vmatprep.mubr.bf16.mxu0 %v212
    %374 = vmatmul.mubr.bf16.gmra.mxu0 %v211
    %v375 = vpop.f32.mrf.mxu0
    %v376 = vadd.f32 %v193, %v375
    %v377 = vpop.f32.mrf.mxu0
    %v378 = vpop.f32.mrf.mxu0
    %v379 = vadd.f32 %v196, %v378
    %v380 = vpop.f32.mrf.mxu0
    %381 = vdwg.mxu0
    %v382 = vld [vmem:[%s2] sm:$0xf]
    %v383 = vld [vmem:[%s2 + $0x4] sm:$0xf]
    %v384 = vunpack.c.l.bf16 %v382
    %v385 = vunpack.c.l.bf16 %v383
    %v386 = vmul.f32 %v376, %v384
    %v387 = vmul.f32 %v379, %v385
    %vm388 = vcmask 64512
    %v389 = vsel %vm388, %v386, -inf
    %390 = vmax.xlane.f32.xlu0 %v389
    %v391 = vpop.xlane.xlu0 %390
    %v392 = vsel %vm388, %v387, -inf
    %393 = vmax.xlane.f32.xlu0 %v392
    %v394 = vpop.xlane.xlu0 %393
    %v395 = vsub.f32 %v386, %v391
    %v396 = vsub.f32 %v387, %v394
    %v397 = vmul.f32 %v395, 1.442695
    %v398 = vpow.pop %v397
    %v399 = vmul.f32 %v396, 1.442695
    %v400 = vpow.pop %v399
    %v401 = vsel %vm388, %v398, 0.0
    %402 = vadd.xlane.f32.xlu0 %v401
    %v403 = vpop.xlane.xlu0 %402
    %v404 = vsel %vm388, %v400, 0.0
    %405 = vadd.xlane.f32.xlu0 %v404
    %v406 = vpop.xlane.xlu0 %405
    %v407 = vrcp.pop %v403
    %v408 = vrcp.pop %v406
    %v409 = vmul.f32 %v398, %v407
    %v410 = vmul.f32 %v400, %v408
    %v411 = vpack.c.bf16 %v410, %v409
    %v412 = vld [vmem:[%s8] sm:$0xff]
    %v414 = vunpack.c.l.b16 %v412
    %v415 = vunpack.c.h.b16 %v412
    %v416 = vpack.c.b16 %v414, %v414
    %v417 = vpack.c.b16 %v415, %v415
    %v419 = vsel %vm388, %v411, 0
    %vm421 = vcmask 1043456
    %v423 = vsel %vm421, %v416, 0
    %v426 = vsel %vm421, %v417, 0
    %428 = vmatprep.subr.bf16.mxu0 0
    %429 = vmatpush1.bf16.msra.mxu0 0
    %430 = vmatprep.subr.bf16.mxu0 0
    %431 = vmatpush1.bf16.msra.mxu0 0
    %432 = vmatprep.subr.bf16.mxu0 0
    %433 = vmatpush1.bf16.msra.mxu0 0
    %434 = vmatprep.subr.bf16.mxu0 0
    %435 = vmatpush1.bf16.msra.mxu0 0
    %436 = vmatprep.subr.bf16.mxu0 0
    %437 = vmatpush1.bf16.msra.mxu0 0
    %438 = vmatprep.subr.bf16.mxu0 0
    %439 = vmatpush1.bf16.msra.mxu0 0
    %440 = vmatprep.subr.bf16.mxu0 0
    %441 = vmatpush1.bf16.msra.mxu0 0
    %442 = vmatprep.subr.bf16.mxu0 %v426
    %443 = vmatpush1.bf16.msra.mxu0 %v423
    %444 = vmatprep.subr.bf16.mxu0 0
    %445 = vmatpush2.bf16.msra.mxu0 0
    %446 = vmatprep.subr.bf16.mxu0 0
    %447 = vmatpush2.bf16.msra.mxu0 0
    %448 = vmatprep.subr.bf16.mxu0 0
    %449 = vmatpush2.bf16.msra.mxu0 0
    %450 = vmatprep.subr.bf16.mxu0 0
    %451 = vmatpush2.bf16.msra.mxu0 0
    %452 = vmatprep.subr.bf16.mxu0 0
    %453 = vmatpush2.bf16.msra.mxu0 0
    %454 = vmatprep.subr.bf16.mxu0 0
    %455 = vmatpush2.bf16.msra.mxu0 0
    %456 = vmatprep.subr.bf16.mxu0 0
    %457 = vmatpush2.bf16.msra.mxu0 0
    %458 = vmatprep.subr.bf16.mxu0 0
    %459 = vmatpush2.bf16.msra.mxu0 0
    %460 = vmatprep.mubr.bf16.mxu0 0
    %461 = vmatmul.mubr.bf16.gmra.mxu0 %v419
    %v462 = vpop.f32.mrf.mxu0
    %v463 = vadd.f32 0.0, %v462
    %v464 = vpop.f32.mrf.mxu0
    %v465 = vadd.f32 0.0, %v464
    %v466 = vpop.f32.mrf.mxu0
    %v467 = vadd.f32 0.0, %v466
    %v468 = vpop.f32.mrf.mxu0
    %v469 = vadd.f32 0.0, %v468
    %470 = vdwg.mxu0
    %v471 = vpack.c.bf16 %v467, %v463
    %v472 = vpack.c.bf16 %v469, %v465
    %v473 = vmul.bf16 %v471, %v207
    %v474 = vmul.bf16 %v472, %v208
    %v475 = vld [vmem:[%s9] sm:$0xf]
    %v476 = vld [vmem:[%s9 + $0x4] sm:$0xf]
    %v477 = vld [vmem:[%s9 + $0x8] sm:$0xf]
    %v478 = vld [vmem:[%s9 + $0xc] sm:$0xf]
    %v479 = vld [vmem:[%s9 + $0x10] sm:$0xf]
    %v480 = vld [vmem:[%s9 + $0x14] sm:$0xf]
    %v481 = vld [vmem:[%s9 + $0x18] sm:$0xf]
    %v482 = vld [vmem:[%s9 + $0x1c] sm:$0xf]
    %v483 = vld [vmem:[%s9 + $0x20] sm:$0xf]
    %v484 = vld [vmem:[%s9 + $0x24] sm:$0xf]
    %v485 = vld [vmem:[%s9 + $0x28] sm:$0xf]
    %v486 = vld [vmem:[%s9 + $0x2c] sm:$0xf]
    %v487 = vld [vmem:[%s9 + $0x30] sm:$0xf]
    %v488 = vld [vmem:[%s9 + $0x34] sm:$0xf]
    %v489 = vld [vmem:[%s9 + $0x38] sm:$0xf]
    %v490 = vld [vmem:[%s9 + $0x3c] sm:$0xf]
    %v491 = vld [vmem:[%s9 + $0x40] sm:$0xf]
    %v492 = vld [vmem:[%s9 + $0x44] sm:$0xf]
    %v493 = vld [vmem:[%s9 + $0x48] sm:$0xf]
    %v494 = vld [vmem:[%s9 + $0x4c] sm:$0xf]
    %v495 = vld [vmem:[%s9 + $0x50] sm:$0xf]
    %v496 = vld [vmem:[%s9 + $0x54] sm:$0xf]
    %v497 = vld [vmem:[%s9 + $0x58] sm:$0xf]
    %v498 = vld [vmem:[%s9 + $0x5c] sm:$0xf]
    %v499 = vld [vmem:[%s9 + $0x60] sm:$0xf]
    %v500 = vld [vmem:[%s9 + $0x64] sm:$0xf]
    %v501 = vld [vmem:[%s9 + $0x68] sm:$0xf]
    %v502 = vld [vmem:[%s9 + $0x6c] sm:$0xf]
    %v503 = vld [vmem:[%s9 + $0x70] sm:$0xf]
    %v504 = vld [vmem:[%s9 + $0x74] sm:$0xf]
    %v505 = vld [vmem:[%s9 + $0x78] sm:$0xf]
    %v506 = vld [vmem:[%s9 + $0x7c] sm:$0xf]
    %v539 = vunpack.c.l.b16 %v475
    %v540 = vunpack.c.l.b16 %v476
    %v541 = vunpack.c.l.b16 %v477
    %v542 = vunpack.c.l.b16 %v478
    %v543 = vunpack.c.l.b16 %v479
    %v544 = vunpack.c.l.b16 %v480
    %v545 = vunpack.c.l.b16 %v481
    %v546 = vunpack.c.l.b16 %v482
    %v547 = vunpack.c.l.b16 %v483
    %v548 = vunpack.c.l.b16 %v484
    %v549 = vunpack.c.l.b16 %v485
    %v550 = vunpack.c.l.b16 %v486
    %v551 = vunpack.c.l.b16 %v487
    %v552 = vunpack.c.l.b16 %v488
    %v553 = vunpack.c.l.b16 %v489
    %v554 = vunpack.c.l.b16 %v490
    %v555 = vunpack.c.l.b16 %v491
    %v556 = vunpack.c.l.b16 %v492
    %v557 = vunpack.c.l.b16 %v493
    %v558 = vunpack.c.l.b16 %v494
    %v559 = vunpack.c.l.b16 %v495
    %v560 = vunpack.c.l.b16 %v496
    %v561 = vunpack.c.l.b16 %v497
    %v562 = vunpack.c.l.b16 %v498
    %v563 = vunpack.c.l.b16 %v499
    %v564 = vunpack.c.l.b16 %v500
    %v565 = vunpack.c.l.b16 %v501
    %v566 = vunpack.c.l.b16 %v502
    %v567 = vunpack.c.l.b16 %v503
    %v568 = vunpack.c.l.b16 %v504
    %v569 = vunpack.c.l.b16 %v505
    %v570 = vunpack.c.l.b16 %v506
    %v571 = vpack.c.b16 %v540, %v539
    %v572 = vpack.c.b16 %v542, %v541
    %v573 = vpack.c.b16 %v544, %v543
    %v574 = vpack.c.b16 %v546, %v545
    %v575 = vpack.c.b16 %v548, %v547
    %v576 = vpack.c.b16 %v550, %v549
    %v577 = vpack.c.b16 %v552, %v551
    %v578 = vpack.c.b16 %v554, %v553
    %v579 = vpack.c.b16 %v556, %v555
    %v580 = vpack.c.b16 %v558, %v557
    %v581 = vpack.c.b16 %v560, %v559
    %v582 = vpack.c.b16 %v562, %v561
    %v583 = vpack.c.b16 %v564, %v563
    %v584 = vpack.c.b16 %v566, %v565
    %v585 = vpack.c.b16 %v568, %v567
    %v586 = vpack.c.b16 %v570, %v569
    %603 = vmatprep.subr.bf16.mxu0 0
    %604 = vmatpush1.bf16.msra.mxu0 %v578
    %605 = vmatprep.subr.bf16.mxu0 0
    %606 = vmatpush1.bf16.msra.mxu0 %v577
    %607 = vmatprep.subr.bf16.mxu0 0
    %608 = vmatpush1.bf16.msra.mxu0 %v576
    %609 = vmatprep.subr.bf16.mxu0 0
    %610 = vmatpush1.bf16.msra.mxu0 %v575
    %611 = vmatprep.subr.bf16.mxu0 0
    %612 = vmatpush1.bf16.msra.mxu0 %v574
    %613 = vmatprep.subr.bf16.mxu0 0
    %614 = vmatpush1.bf16.msra.mxu0 %v573
    %615 = vmatprep.subr.bf16.mxu0 0
    %616 = vmatpush1.bf16.msra.mxu0 %v572
    %617 = vmatprep.subr.bf16.mxu0 0
    %618 = vmatpush1.bf16.msra.mxu0 %v571
    %619 = vmatprep.subr.bf16.mxu0 0
    %620 = vmatpush2.bf16.msra.mxu0 %v586
    %621 = vmatprep.subr.bf16.mxu0 0
    %622 = vmatpush2.bf16.msra.mxu0 %v585
    %623 = vmatprep.subr.bf16.mxu0 0
    %624 = vmatpush2.bf16.msra.mxu0 %v584
    %625 = vmatprep.subr.bf16.mxu0 0
    %626 = vmatpush2.bf16.msra.mxu0 %v583
    %627 = vmatprep.subr.bf16.mxu0 0
    %628 = vmatpush2.bf16.msra.mxu0 %v582
    %629 = vmatprep.subr.bf16.mxu0 0
    %630 = vmatpush2.bf16.msra.mxu0 %v581
    %631 = vmatprep.subr.bf16.mxu0 0
    %632 = vmatpush2.bf16.msra.mxu0 %v580
    %633 = vmatprep.subr.bf16.mxu0 0
    %634 = vmatpush2.bf16.msra.mxu0 %v579
    %635 = vmatprep.mubr.bf16.mxu0 %v474
    %636 = vmatmul.mubr.bf16.gmra.mxu0 %v473
    %v637 = vpop.f32.mrf.mxu0
    %v638 = vadd.f32 0.0, %v637
    %v639 = vpop.f32.mrf.mxu0
    %v640 = vpop.f32.mrf.mxu0
    %v641 = vadd.f32 0.0, %v640
    %v642 = vpop.f32.mrf.mxu0
    %643 = vdwg.mxu0
    %v644 = vpack.c.bf16 %v641, %v638
    %v645 = vld [vmem:[%s10] sm:$0xf]
    %v646 = vld [vmem:[%s10 + $0x4] sm:$0xf]
    %v647 = vld [vmem:[%s10 + $0x8] sm:$0xf]
    %v648 = vld [vmem:[%s10 + $0xc] sm:$0xf]
    %v649 = vld [vmem:[%s11] sm:$0x1]
    %v651 = vlaneseq
    %v652 = vshrl.u32 %v651, 7
    %v653 = vsub.s32 0, %v652
    %v654 = vrot.slane %v649, %v653
    %v660 = vunpack.c.l.b16 %v645
    %v661 = vunpack.c.l.b16 %v646
    %v662 = vunpack.c.l.b16 %v647
    %v663 = vunpack.c.l.b16 %v648
    %v664 = vpack.c.b16 %v661, %v660
    %v665 = vpack.c.b16 %v663, %v662
    %v669 = vsel %vm88, %v644, 0
    %671 = vmatprep.subr.bf16.mxu0 0
    %672 = vmatpush1.bf16.msra.mxu0 0
    %673 = vmatprep.subr.bf16.mxu0 0
    %674 = vmatpush1.bf16.msra.mxu0 0
    %675 = vmatprep.subr.bf16.mxu0 0
    %676 = vmatpush1.bf16.msra.mxu0 0
    %677 = vmatprep.subr.bf16.mxu0 0
    %678 = vmatpush1.bf16.msra.mxu0 0
    %679 = vmatprep.subr.bf16.mxu0 0
    %680 = vmatpush1.bf16.msra.mxu0 0
    %681 = vmatprep.subr.bf16.mxu0 0
    %682 = vmatpush1.bf16.msra.mxu0 0
    %683 = vmatprep.subr.bf16.mxu0 0
    %684 = vmatpush1.bf16.msra.mxu0 %v665
    %685 = vmatprep.subr.bf16.mxu0 0
    %686 = vmatpush1.bf16.msra.mxu0 %v664
    %687 = vmatprep.subr.bf16.mxu0 0
    %688 = vmatpush2.bf16.msra.mxu0 0
    %689 = vmatprep.subr.bf16.mxu0 0
    %690 = vmatpush2.bf16.msra.mxu0 0
    %691 = vmatprep.subr.bf16.mxu0 0
    %692 = vmatpush2.bf16.msra.mxu0 0
    %693 = vmatprep.subr.bf16.mxu0 0
    %694 = vmatpush2.bf16.msra.mxu0 0
    %695 = vmatprep.subr.bf16.mxu0 0
    %696 = vmatpush2.bf16.msra.mxu0 0
    %697 = vmatprep.subr.bf16.mxu0 0
    %698 = vmatpush2.bf16.msra.mxu0 0
    %699 = vmatprep.subr.bf16.mxu0 0
    %700 = vmatpush2.bf16.msra.mxu0 0
    %701 = vmatprep.subr.bf16.mxu0 0
    %702 = vmatpush2.bf16.msra.mxu0 0
    %703 = vmatprep.mubr.bf16.mxu0 0
    %704 = vmatmul.mubr.bf16.gmra.mxu0 %v669
    %v705 = vpop.f32.mrf.mxu0
    %v706 = vadd.f32 %v654, %v705
    %v707 = vpop.f32.mrf.mxu0
    %v708 = vpop.f32.mrf.mxu0
    %v709 = vadd.f32 %v654, %v708
    %v710 = vpop.f32.mrf.mxu0
    %711 = vdwg.mxu0
    %v712 = vpack.c.bf16 %v709, %v706
    %v714 = vunpack.c.l.b16 %v712
    %v715 = vunpack.c.h.b16 %v712
    %v716 = vpack.c.b16 %v714, %v714
    %v717 = vpack.c.b16 %v715, %v715
    %720 = vst [vmem:[#allocation2] sm:$0xf] %v716
    %721 = vst [vmem:[#allocation2 + $0x4] sm:$0xf] %v717
    // Predicated region
    $region50: #{tpu_custom_call.1} parent=1 // pred_check
      _
    $region51: #{tpu_custom_call.1} parent=1 // pred_check_branch
      %723 = sbr.rel (0) target = $region53
    $region52: #{tpu_custom_call.1} parent=1 // pred_region
      %s725 = ssub.s32 128, 128
      %726 = vsyncadd [#allocation3], %s725
      %s727 = sshll.u32 [#allocation2], 4
      %s728 = int_to_ptr.vmem [resolvable:$true] %s727
      %733 = dma.vmem_to_hbm [thread:$0]  %s728, 128, %s12, [#allocation3], 64, 64, 4
    $region53: #{tpu_custom_call.1} parent=1 // pred_fallthru
      _
    // Predicated region
    $region54: #{tpu_custom_call.1} parent=1 // pred_check
      _
    $region55: #{tpu_custom_call.1} parent=1 // pred_check_branch
      %735 = sbr.rel (0) target = $region57
    $region56: #{tpu_custom_call.1} parent=1 // pred_region
      %736 = dma.done [#allocation3], 128
    $region57: #{tpu_custom_call.1} parent=1 // pred_fallthru
      _
    %737 = vsyncpa [#allocation3], 1

</llo_original>
